<compile_context>
chip_gen: v6e
topology: v6e:2x2x1
jax: 0.10.0
libtpu: 0.0.40
codegen_flags: <defaults>
</compile_context>

<pallas_src>
import math

import jax
import jax.numpy as jnp
from jax.experimental import pallas as pl
from jax.experimental.pallas import tpu as pltpu


# ----------------------------------------------------------------------------
# Kernel
# ----------------------------------------------------------------------------
def actor_critic_kernel(
    x_ref,                                    # (TB, D+S) = [action | state]
    w1_ref, b1_ref, w2_ref, b2_ref, w3_ref, b3_ref,
    inv_var_ref,                              # (1, D)
    out_ref,                                  # (TB, 2)
):
    d = inv_var_ref.shape[-1]
    x = x_ref[...]

    # Layer 1: w1 has D leading zero rows, so the fused [action|state] input
    # multiplies straight through (action columns contribute nothing).
    h = jnp.tanh(jnp.dot(x, w1_ref[...],
                         preferred_element_type=jnp.float32) + b1_ref[...])   # (TB,128)
    h = jnp.tanh(jnp.dot(h, w2_ref[...],
                         preferred_element_type=jnp.float32) + b2_ref[...])   # (TB, 64)
    y = jnp.dot(h, w3_ref[...],
                preferred_element_type=jnp.float32) + b3_ref[...]             # (TB,128)

    a_mean = jnp.tanh(y[:, :d])               # actor head columns
    value = y[:, d:d + 1]                     # critic head column (no tanh)

    diff = x[:, :d] - a_mean                  # action columns sit at lane offset 0
    maha = jnp.sum(diff * diff * inv_var_ref[...], axis=-1, keepdims=True)    # (TB,1)

    # Narrow, lane-contiguous output: col 0 = -0.5*maha, col 1 = value.
    out_ref[...] = jnp.concatenate([-0.5 * maha, value], axis=-1)


# ----------------------------------------------------------------------------
# Parameter construction / fusion (done once, outside the kernel)
# ----------------------------------------------------------------------------
def make_params(key, state_dim, action_dim, action_std):
    """Deterministic init mimicking nn.Linear's uniform(-1/sqrt(fan_in))."""
    def linear(k, fan_in, fan_out):
        kw, kb = jax.random.split(k)
        bound = 1.0 / math.sqrt(fan_in)
        w = jax.random.uniform(kw, (fan_in, fan_out), jnp.float32, -bound, bound)
        b = jax.random.uniform(kb, (1, fan_out), jnp.float32, -bound, bound)
        return w, b

    keys = jax.random.split(key, 6)
    wa1, ba1 = linear(keys[0], state_dim, 64)
    wa2, ba2 = linear(keys[1], 64, 32)
    wa3, ba3 = linear(keys[2], 32, action_dim)
    wc1, bc1 = linear(keys[3], state_dim, 64)
    wc2, bc2 = linear(keys[4], 64, 32)
    wc3, bc3 = linear(keys[5], state_dim and 32, 1)
    a_var = jnp.full((1, action_dim), action_std * action_std, jnp.float32)
    return (wa1, ba1, wa2, ba2, wa3, ba3,
            wc1, bc1, wc2, bc2, wc3, bc3, a_var)


def fuse_params(params):
    """Fuse actor+critic weights into wide / block-diagonal matrices (once).

    Layer-1 weight is laid out for the fused [action | state] input: D zero
    rows for the action columns, then [wa1 | wc1] for the state columns.
    """
    (wa1, ba1, wa2, ba2, wa3, ba3,
     wc1, bc1, wc2, bc2, wc3, bc3, a_var) = params
    d = wa3.shape[1]

    # Layout assumptions that the fused heads rely on.
    assert d + 1 <= 128, "actor + critic heads must fit in 128 output lanes"
    assert wa1.shape[1] == 64 and wc1.shape[1] == 64
    assert wa2.shape == (64, 32) and wc2.shape == (64, 32)
    assert wa3.shape[0] == 32 and wc3.shape == (32, 1)

    w1_state = jnp.concatenate([wa1, wc1], axis=1)             # (S, 128)
    w1f = jnp.concatenate(
        [jnp.zeros((d, 128), jnp.float32), w1_state], axis=0)  # (D+S, 128)
    b1f = jnp.concatenate([ba1, bc1], axis=1)                  # (1, 128)

    z = jnp.zeros((64, 32), jnp.float32)
    w2f = jnp.concatenate(
        [jnp.concatenate([wa2, z], axis=1),
         jnp.concatenate([z, wc2], axis=1)], axis=0)           # (128, 64) block-diag
    b2f = jnp.concatenate([ba2, bc2], axis=1)                  # (1, 64)

    w3f = jnp.zeros((64, 128), jnp.float32)
    w3f = w3f.at[:32, :d].set(wa3)                             # actor head
    w3f = w3f.at[32:64, d:d + 1].set(wc3)                      # critic head
    b3f = jnp.zeros((1, 128), jnp.float32)
    b3f = b3f.at[:, :d].set(ba3)
    b3f = b3f.at[:, d:d + 1].set(bc3)

    inv_var = 1.0 / a_var                                      # (1, D)
    logdet = jnp.sum(jnp.log(a_var))                           # scalar
    return (w1f, b1f, w2f, b2f, w3f, b3f, inv_var, logdet)


# ----------------------------------------------------------------------------
# Wrapper
# ----------------------------------------------------------------------------
def _round_up(x, m):
    return (x + m - 1) // m * m


def actor_critic_evaluate(state, action, fused, *, tb=2048):
    """Returns (logprob, value, entropy), each shape (B,), like torch evaluate()."""
    w1f, b1f, w2f, b2f, w3f, b3f, inv_var, logdet = fused
    B, S = state.shape
    D = action.shape[1]
    F = D + S
    assert w1f.shape[0] == F, "fused layer-1 weight does not match [action|state]"

    # Single fused input stream: [action | state], one DMA per grid step.
    x = jnp.concatenate([action, state], axis=1)

    # Batch tile: large (amortizes ~0.35us/step overhead), multiple of 8, and
    # split so the grid has >= 2 steps whenever possible (v7x uses both TCs).
    tb = max(8, _round_up(int(tb), 8))
    TB = min(tb, _round_up(B, 8))
    if _round_up(B, TB) == TB and B > 8:
        TB = _round_up((B + 1) // 2, 8)
    Bp = _round_up(B, TB)
    if Bp != B:
        x = jnp.pad(x, ((0, Bp - B), (0, 0)))
    grid = (Bp // TB,)

    const_spec = lambda shape: pl.BlockSpec(shape, lambda i: (0, 0))
    in_specs = [
        pl.BlockSpec((TB, F), lambda i: (i, 0)),      # [action|state], batch-tiled
        const_spec(w1f.shape), const_spec(b1f.shape),
        const_spec(w2f.shape), const_spec(b2f.shape),
        const_spec(w3f.shape), const_spec(b3f.shape),
        const_spec(inv_var.shape),
    ]
    out_spec = pl.BlockSpec((TB, 2), lambda i: (i, 0))

    weight_elems = sum(a.size for a in (w1f, b1f, w2f, b2f, w3f, b3f, inv_var))
    cost = pl.CostEstimate(
        flops=2 * Bp * (F * 128 + 128 * 64 + 64 * 128),
        transcendentals=Bp * (128 + 64 + D),
        bytes_accessed=4 * (Bp * F + Bp * 2 + weight_elems),
    )

    # Explicit scoped-VMEM limit (v5e defaults to 16 MiB; v7x physical is
    # 64 MiB).  Lane-padded, double-buffered footprint scaled with TB.
    lane = 128
    vmem_est = (2 * TB * _round_up(F, lane) * 4      # input block, 2 buffers
                + 2 * TB * lane * 4                  # output block (lane-padded)
                + 4 * TB * lane * 4                  # intermediates h1/h2/y/diff
                + 2 * 4 * weight_elems)              # resident weights
    vmem_limit = int(min(max(vmem_est + (4 << 20), 32 << 20), 48 << 20))

    out = pl.pallas_call(
        actor_critic_kernel,
        out_shape=jax.ShapeDtypeStruct((Bp, 2), jnp.float32),
        grid=grid,
        in_specs=in_specs,
        out_specs=out_spec,
        compiler_params=pltpu.CompilerParams(
            dimension_semantics=("parallel",),       # v7x: shard batch over 2 TCs
            vmem_limit_bytes=vmem_limit,
        ),
        cost_estimate=cost,
    )(x, w1f, b1f, w2f, b2f, w3f, b3f, inv_var)

    # Hoisted constant terms of the diagonal-MVN log_prob / entropy.
    log2pi = math.log(2.0 * math.pi)
    logprob_const = -0.5 * (D * log2pi) - 0.5 * logdet
    entropy_const = 0.5 * D * (1.0 + log2pi) + 0.5 * logdet

    logprob = out[:B, 0] + logprob_const
    value = out[:B, 1]
    entropy = jnp.broadcast_to(entropy_const.astype(jnp.float32), (B,))
    return logprob, value, entropy


# ----------------------------------------------------------------------------
# Pure-JAX reference (mirrors the PyTorch module)
# ----------------------------------------------------------------------------
def reference_evaluate(state, action, params):
    (wa1, ba1, wa2, ba2, wa3, ba3,
     wc1, bc1, wc2, bc2, wc3, bc3, a_var) = params
    h = jnp.tanh(state @ wa1 + ba1)
    h = jnp.tanh(h @ wa2 + ba2)
    a_mean = jnp.tanh(h @ wa3 + ba3)
    c = jnp.tanh(state @ wc1 + bc1)
    c = jnp.tanh(c @ wc2 + bc2)
    value = (c @ wc3 + bc3)[:, 0]
    d = a_var.shape[-1]
    diff = action - a_mean
    maha = jnp.sum(diff * diff / a_var, axis=-1)
    logdet = jnp.sum(jnp.log(a_var))
    log2pi = math.log(2.0 * math.pi)
    logprob = -0.5 * (maha + d * log2pi) - 0.5 * logdet
    entropy = jnp.full((state.shape[0],),
                       0.5 * d * (1.0 + log2pi) + 0.5 * logdet, jnp.float32)
    return logprob, value, entropy


if __name__ == "__main__":
    key = jax.random.PRNGKey(0)
    k_param, k_state, k_action = jax.random.split(key, 3)

    B, STATE_DIM, ACTION_DIM, ACTION_STD = 8, 32, 8, 0.5

    params = make_params(k_param, STATE_DIM, ACTION_DIM, ACTION_STD)
    fused = fuse_params(params)

    state = jax.random.normal(k_state, (B, STATE_DIM), jnp.float32)
    action = jax.random.normal(k_action, (B, ACTION_DIM), jnp.float32)

    logprob, value, entropy = actor_critic_evaluate(state, action, fused)
    jax.block_until_ready((logprob, value, entropy))

    lp_ref, v_ref, e_ref = reference_evaluate(state, action, params)
    assert jnp.allclose(logprob, lp_ref, atol=1e-4, rtol=1e-4)
    assert jnp.allclose(value, v_ref, atol=1e-4, rtol=1e-4)
    assert jnp.allclose(entropy, e_ref, atol=1e-4, rtol=1e-4)

    # Exercise the multi-step batch grid + padding path (non-multiple batch).
    B2 = 300
    k2s, k2a = jax.random.split(jax.random.PRNGKey(1))
    state2 = jax.random.normal(k2s, (B2, STATE_DIM), jnp.float32)
    action2 = jax.random.normal(k2a, (B2, ACTION_DIM), jnp.float32)
    lp2, v2, e2 = actor_critic_evaluate(state2, action2, fused, tb=128)
    jax.block_until_ready((lp2, v2, e2))
    lp2_r, v2_r, e2_r = reference_evaluate(state2, action2, params)
    assert jnp.allclose(lp2, lp2_r, atol=1e-4, rtol=1e-4)
    assert jnp.allclose(v2, v2_r, atol=1e-4, rtol=1e-4)
    assert jnp.allclose(e2, e2_r, atol=1e-4, rtol=1e-4)

    # Default tile path: TB auto-split so grid has >= 2 steps (v7x megacore).
    lp3, v3, e3 = actor_critic_evaluate(state2, action2, fused)
    jax.block_until_ready((lp3, v3, e3))
    assert jnp.allclose(lp3, lp2_r, atol=1e-4, rtol=1e-4)
    assert jnp.allclose(v3, v2_r, atol=1e-4, rtol=1e-4)
    assert jnp.allclose(e3, e2_r, atol=1e-4, rtol=1e-4)

    print("KERNEL_OK")
</pallas_src>

<mosaic_0001>
module attributes {stable_mosaic.version = 11 : i64} {
  func.func @actor_critic_kernel(%arg0: i32, %arg1: memref<8x40xf32, #tpu.memory_space<vmem>>, %arg2: memref<40x128xf32, #tpu.memory_space<vmem>>, %arg3: memref<1x128xf32, #tpu.memory_space<vmem>>, %arg4: memref<128x64xf32, #tpu.memory_space<vmem>>, %arg5: memref<1x64xf32, #tpu.memory_space<vmem>>, %arg6: memref<64x128xf32, #tpu.memory_space<vmem>>, %arg7: memref<1x128xf32, #tpu.memory_space<vmem>>, %arg8: memref<1x8xf32, #tpu.memory_space<vmem>>, %arg9: memref<8x2xf32, #tpu.memory_space<vmem>>) attributes {dimension_semantics = [#tpu.dimension_semantics<parallel>], iteration_bounds = array<i64: 1>, scalar_prefetch = 0 : i64, scratch_operands = 0 : i64, tpu.core_type = #tpu.core_type<tc>, window_params = [{transform_indices = @transform_0, window_bounds = array<i64: 8, 40>}, {pipeline_mode = #tpu.pipeline_mode<synchronous>, transform_indices = @transform_1, window_bounds = array<i64: 40, 128>}, {pipeline_mode = #tpu.pipeline_mode<synchronous>, transform_indices = @transform_2, window_bounds = array<i64: 1, 128>}, {pipeline_mode = #tpu.pipeline_mode<synchronous>, transform_indices = @transform_3, window_bounds = array<i64: 128, 64>}, {pipeline_mode = #tpu.pipeline_mode<synchronous>, transform_indices = @transform_4, window_bounds = array<i64: 1, 64>}, {pipeline_mode = #tpu.pipeline_mode<synchronous>, transform_indices = @transform_5, window_bounds = array<i64: 64, 128>}, {pipeline_mode = #tpu.pipeline_mode<synchronous>, transform_indices = @transform_6, window_bounds = array<i64: 1, 128>}, {pipeline_mode = #tpu.pipeline_mode<synchronous>, transform_indices = @transform_7, window_bounds = array<i64: 1, 8>}, {transform_indices = @transform_8, window_bounds = array<i64: 8, 2>}]} {
    %c0 = arith.constant 0 : index
    %c0_0 = arith.constant 0 : index
    %0 = vector.load %arg1[%c0, %c0_0] : memref<8x40xf32, #tpu.memory_space<vmem>>, vector<8x40xf32>
    %c0_1 = arith.constant 0 : index
    %c0_2 = arith.constant 0 : index
    %1 = vector.load %arg2[%c0_1, %c0_2] : memref<40x128xf32, #tpu.memory_space<vmem>>, vector<40x128xf32>
    %cst = arith.constant dense<0.000000e+00> : vector<8x128xf32>
    %2 = tpu.matmul %0, %1, %cst {dimension_numbers = #tpu.dot_dimension_numbers<[1], [0], [0], [1], [0, 0, 1, 1], [], []>} : vector<8x40xf32>, vector<40x128xf32>, vector<8x128xf32> -> vector<8x128xf32>
    %c0_3 = arith.constant 0 : index
    %c0_4 = arith.constant 0 : index
    %3 = vector.load %arg3[%c0_3, %c0_4] : memref<1x128xf32, #tpu.memory_space<vmem>>, vector<1x128xf32>
    %4 = vector.broadcast %3 : vector<1x128xf32> to vector<8x128xf32>
    %5 = arith.addf %2, %4 : vector<8x128xf32>
    %6 = math.tanh %5 : vector<8x128xf32>
    %c0_5 = arith.constant 0 : index
    %c0_6 = arith.constant 0 : index
    %7 = vector.load %arg4[%c0_5, %c0_6] : memref<128x64xf32, #tpu.memory_space<vmem>>, vector<128x64xf32>
    %cst_7 = arith.constant dense<0.000000e+00> : vector<8x64xf32>
    %8 = tpu.matmul %6, %7, %cst_7 {dimension_numbers = #tpu.dot_dimension_numbers<[1], [0], [0], [1], [0, 0, 1, 1], [], []>} : vector<8x128xf32>, vector<128x64xf32>, vector<8x64xf32> -> vector<8x64xf32>
    %c0_8 = arith.constant 0 : index
    %c0_9 = arith.constant 0 : index
    %9 = vector.load %arg5[%c0_8, %c0_9] : memref<1x64xf32, #tpu.memory_space<vmem>>, vector<1x64xf32>
    %10 = vector.broadcast %9 : vector<1x64xf32> to vector<8x64xf32>
    %11 = arith.addf %8, %10 : vector<8x64xf32>
    %12 = math.tanh %11 : vector<8x64xf32>
    %c0_10 = arith.constant 0 : index
    %c0_11 = arith.constant 0 : index
    %13 = vector.load %arg6[%c0_10, %c0_11] : memref<64x128xf32, #tpu.memory_space<vmem>>, vector<64x128xf32>
    %cst_12 = arith.constant dense<0.000000e+00> : vector<8x128xf32>
    %14 = tpu.matmul %12, %13, %cst_12 {dimension_numbers = #tpu.dot_dimension_numbers<[1], [0], [0], [1], [0, 0, 1, 1], [], []>} : vector<8x64xf32>, vector<64x128xf32>, vector<8x128xf32> -> vector<8x128xf32>
    %c0_13 = arith.constant 0 : index
    %c0_14 = arith.constant 0 : index
    %15 = vector.load %arg7[%c0_13, %c0_14] : memref<1x128xf32, #tpu.memory_space<vmem>>, vector<1x128xf32>
    %16 = vector.broadcast %15 : vector<1x128xf32> to vector<8x128xf32>
    %17 = arith.addf %14, %16 : vector<8x128xf32>
    %18 = vector.extract_strided_slice %17 {offsets = [0, 0], sizes = [8, 8], strides = [1, 1]} : vector<8x128xf32> to vector<8x8xf32>
    %19 = math.tanh %18 : vector<8x8xf32>
    %20 = vector.extract_strided_slice %17 {offsets = [0, 8], sizes = [8, 1], strides = [1, 1]} : vector<8x128xf32> to vector<8x1xf32>
    %21 = vector.extract_strided_slice %0 {offsets = [0, 0], sizes = [8, 8], strides = [1, 1]} : vector<8x40xf32> to vector<8x8xf32>
    %22 = arith.subf %21, %19 : vector<8x8xf32>
    %23 = arith.mulf %22, %22 : vector<8x8xf32>
    %c0_15 = arith.constant 0 : index
    %c0_16 = arith.constant 0 : index
    %24 = vector.load %arg8[%c0_15, %c0_16] : memref<1x8xf32, #tpu.memory_space<vmem>>, vector<1x8xf32>
    %25 = vector.broadcast %24 : vector<1x8xf32> to vector<8x8xf32>
    %26 = arith.mulf %23, %25 : vector<8x8xf32>
    %cst_17 = arith.constant dense<0.000000e+00> : vector<8xf32>
    %27 = vector.multi_reduction <add>, %26, %cst_17 [1] : vector<8x8xf32> to vector<8xf32>
    %28 = vector.shape_cast %27 : vector<8xf32> to vector<8x1xf32>
    %cst_18 = arith.constant -5.000000e-01 : f32
    %29 = vector.broadcast %cst_18 : f32 to vector<8x1xf32>
    %30 = arith.mulf %29, %28 : vector<8x1xf32>
    %31 = tpu.concatenate %30, %20 in 1 : vector<8x1xf32>, vector<8x1xf32> -> vector<8x2xf32>
    %c0_19 = arith.constant 0 : index
    %c0_20 = arith.constant 0 : index
    %32 = vector.load %arg9[%c0_19, %c0_20] : memref<8x2xf32, #tpu.memory_space<vmem>>, vector<8x2xf32>
    tpu.vector_store %arg9[%c0_19, %c0_20], %31 {strides = array<i32>} : memref<8x2xf32, #tpu.memory_space<vmem>>, vector<8x2xf32>,
    return
  }
  func.func @transform_0(%arg0: i32) -> (i32, i32) {
    %c0_i32 = arith.constant 0 : i32
    %c0_i32_0 = arith.constant 0 : i32
    return %arg0, %c0_i32 : i32, i32
  }
  func.func @transform_1(%arg0: i32) -> (i32, i32) {
    %c0_i32 = arith.constant 0 : i32
    %c0_i32_0 = arith.constant 0 : i32
    %c0_i32_1 = arith.constant 0 : i32
    return %c0_i32, %c0_i32_0 : i32, i32
  }
  func.func @transform_2(%arg0: i32) -> (i32, i32) {
    %c0_i32 = arith.constant 0 : i32
    %c0_i32_0 = arith.constant 0 : i32
    %c0_i32_1 = arith.constant 0 : i32
    return %c0_i32, %c0_i32_0 : i32, i32
  }
  func.func @transform_3(%arg0: i32) -> (i32, i32) {
    %c0_i32 = arith.constant 0 : i32
    %c0_i32_0 = arith.constant 0 : i32
    %c0_i32_1 = arith.constant 0 : i32
    return %c0_i32, %c0_i32_0 : i32, i32
  }
  func.func @transform_4(%arg0: i32) -> (i32, i32) {
    %c0_i32 = arith.constant 0 : i32
    %c0_i32_0 = arith.constant 0 : i32
    %c0_i32_1 = arith.constant 0 : i32
    return %c0_i32, %c0_i32_0 : i32, i32
  }
  func.func @transform_5(%arg0: i32) -> (i32, i32) {
    %c0_i32 = arith.constant 0 : i32
    %c0_i32_0 = arith.constant 0 : i32
    %c0_i32_1 = arith.constant 0 : i32
    return %c0_i32, %c0_i32_0 : i32, i32
  }
  func.func @transform_6(%arg0: i32) -> (i32, i32) {
    %c0_i32 = arith.constant 0 : i32
    %c0_i32_0 = arith.constant 0 : i32
    %c0_i32_1 = arith.constant 0 : i32
    return %c0_i32, %c0_i32_0 : i32, i32
  }
  func.func @transform_7(%arg0: i32) -> (i32, i32) {
    %c0_i32 = arith.constant 0 : i32
    %c0_i32_0 = arith.constant 0 : i32
    %c0_i32_1 = arith.constant 0 : i32
    return %c0_i32, %c0_i32_0 : i32, i32
  }
  func.func @transform_8(%arg0: i32) -> (i32, i32) {
    %c0_i32 = arith.constant 0 : i32
    %c0_i32_0 = arith.constant 0 : i32
    return %arg0, %c0_i32 : i32, i32
  }
}

</mosaic_0001>

<llo_original>
// kernel: tpu_custom_call.1
$region0: #{tpu_custom_call.1}
  #allocation0 [shape = 'u32[]', space=smem, size = 0x4, offset = 0x4, fixed_abs, tag = 'smem constant byte address 0x4 - core index']
  #allocation1 [shape = 'u32[144,128]{1,0:T(1,128)}', space=vmem, size = 0x12000, scoped, tag = 'internal scratch']
  %s0 = inlined_call_operand.vmem [shape: f32[8,40], index: 0, kind: input, shape index: {}]
  %s1 = inlined_call_operand.vmem [shape: f32[40,128], index: 1, kind: input, shape index: {}]
  %s2 = inlined_call_operand.vmem [shape: f32[1,128], index: 2, kind: input, shape index: {}]
  %s3 = inlined_call_operand.vmem [shape: f32[128,64], index: 3, kind: input, shape index: {}]
  %s4 = inlined_call_operand.vmem [shape: f32[1,64], index: 4, kind: input, shape index: {}]
  %s5 = inlined_call_operand.vmem [shape: f32[64,128], index: 5, kind: input, shape index: {}]
  %s6 = inlined_call_operand.vmem [shape: f32[1,128], index: 6, kind: input, shape index: {}]
  %s7 = inlined_call_operand.vmem [shape: f32[1,8], index: 7, kind: input, shape index: {}]
  %s8 = inlined_call_operand.vmem [shape: f32[8,2], index: 8, kind: output, shape index: {}]
  %s9 = sld [smem:[#allocation0]]
  $region42: #{tpu_custom_call.1} parent=0
    _
  %s11 = ssub.s32 1, %s9
  %s12 = scalar_select 0, %s11, %s9
  // Predicated region
  $region2: #{tpu_custom_call.1} parent=0 // pred_check
    _
  $region3: #{tpu_custom_call.1} parent=0 // pred_check_branch
    %14 = sbr.rel (0) target = $region5
  $region4: #{tpu_custom_call.1} parent=0 // pred_region
    _
  $region5: #{tpu_custom_call.1} parent=0 // pred_fallthru
    _
  // Predicated region
  $region6: #{tpu_custom_call.1} parent=0 // pred_check
    _
  $region7: #{tpu_custom_call.1} parent=0 // pred_check_branch
    %16 = sbr.rel (0) target = $region9
  $region8: #{tpu_custom_call.1} parent=0 // pred_region
    _
  $region9: #{tpu_custom_call.1} parent=0 // pred_fallthru
    _
  // Predicated region
  $region10: #{tpu_custom_call.1} parent=0 // pred_check
    _
  $region11: #{tpu_custom_call.1} parent=0 // pred_check_branch
    %18 = sbr.rel (0) target = $region13
  $region12: #{tpu_custom_call.1} parent=0 // pred_region
    _
  $region13: #{tpu_custom_call.1} parent=0 // pred_fallthru
    _
  // Predicated region
  $region14: #{tpu_custom_call.1} parent=0 // pred_check
    _
  $region15: #{tpu_custom_call.1} parent=0 // pred_check_branch
    %20 = sbr.rel (0) target = $region17
  $region16: #{tpu_custom_call.1} parent=0 // pred_region
    _
  $region17: #{tpu_custom_call.1} parent=0 // pred_fallthru
    _
  // Predicated region
  $region18: #{tpu_custom_call.1} parent=0 // pred_check
    _
  $region19: #{tpu_custom_call.1} parent=0 // pred_check_branch
    %22 = sbr.rel (0) target = $region21
  $region20: #{tpu_custom_call.1} parent=0 // pred_region
    _
  $region21: #{tpu_custom_call.1} parent=0 // pred_fallthru
    _
  // Predicated region
  $region22: #{tpu_custom_call.1} parent=0 // pred_check
    _
  $region23: #{tpu_custom_call.1} parent=0 // pred_check_branch
    %24 = sbr.rel (0) target = $region25
  $region24: #{tpu_custom_call.1} parent=0 // pred_region
    _
  $region25: #{tpu_custom_call.1} parent=0 // pred_fallthru
    _
  // Predicated region
  $region26: #{tpu_custom_call.1} parent=0 // pred_check
    _
  $region27: #{tpu_custom_call.1} parent=0 // pred_check_branch
    %26 = sbr.rel (0) target = $region29
  $region28: #{tpu_custom_call.1} parent=0 // pred_region
    _
  $region29: #{tpu_custom_call.1} parent=0 // pred_fallthru
    _
  // Predicated region
  $region30: #{tpu_custom_call.1} parent=0 // pred_check
    _
  $region31: #{tpu_custom_call.1} parent=0 // pred_check_branch
    %28 = sbr.rel (0) target = $region33
  $region32: #{tpu_custom_call.1} parent=0 // pred_region
    _
  $region33: #{tpu_custom_call.1} parent=0 // pred_fallthru
    _
  %v29 = vld [vmem:[%s0] sm:$0xff]
  %v30 = vld [vmem:[%s1] sm:$0xff]
  %v31 = vld [vmem:[%s1 + $0x8] sm:$0xff]
  %v32 = vld [vmem:[%s1 + $0x10] sm:$0xff]
  %v33 = vld [vmem:[%s1 + $0x18] sm:$0xff]
  %v34 = vld [vmem:[%s1 + $0x20] sm:$0xff]
  %v35 = vld [vmem:[%s2] sm:$0x1]
  %v37 = vlaneseq
  %v38 = vshrl.u32 %v37, 7
  %v39 = vsub.s32 0, %v38
  %v40 = vrot.slane %v35, %v39
  %vm42 = vcmask 326656
  %v44 = vsel %vm42, %v29, 0
  %46 = vmatprep.subr.mxu0 0.0
  %47 = vmatpush1.msra.mxu0 0.0
  %48 = vmatprep.subr.mxu0 0.0
  %49 = vmatpush1.msra.mxu0 0.0
  %50 = vmatprep.subr.mxu0 0.0
  %51 = vmatpush1.msra.mxu0 0.0
  %52 = vmatprep.subr.mxu0 0.0
  %53 = vmatpush1.msra.mxu0 0.0
  %54 = vmatprep.subr.mxu0 0.0
  %55 = vmatpush1.msra.mxu0 0.0
  %56 = vmatprep.subr.mxu0 0.0
  %57 = vmatpush1.msra.mxu0 0.0
  %58 = vmatprep.subr.mxu0 0.0
  %59 = vmatpush1.msra.mxu0 0.0
  %60 = vmatprep.subr.mxu0 0.0
  %61 = vmatpush1.msra.mxu0 0.0
  %62 = vmatprep.subr.mxu0 0.0
  %63 = vmatpush1.msra.mxu0 0.0
  %64 = vmatprep.subr.mxu0 0.0
  %65 = vmatpush1.msra.mxu0 0.0
  %66 = vmatprep.subr.mxu0 0.0
  %67 = vmatpush1.msra.mxu0 0.0
  %68 = vmatprep.subr.mxu0 0.0
  %69 = vmatpush1.msra.mxu0 %v34
  %70 = vmatprep.subr.mxu0 0.0
  %71 = vmatpush1.msra.mxu0 %v33
  %72 = vmatprep.subr.mxu0 0.0
  %73 = vmatpush1.msra.mxu0 %v32
  %74 = vmatprep.subr.mxu0 0.0
  %75 = vmatpush1.msra.mxu0 %v31
  %76 = vmatprep.subr.mxu0 0.0
  %77 = vmatpush1.msra.mxu0 %v30
  %78 = vmatprep.subr.mxu0 0.0
  %79 = vmatpush2.msra.mxu0 0.0
  %80 = vmatprep.subr.mxu0 0.0
  %81 = vmatpush2.msra.mxu0 0.0
  %82 = vmatprep.subr.mxu0 0.0
  %83 = vmatpush2.msra.mxu0 0.0
  %84 = vmatprep.subr.mxu0 0.0
  %85 = vmatpush2.msra.mxu0 0.0
  %86 = vmatprep.subr.mxu0 0.0
  %87 = vmatpush2.msra.mxu0 0.0
  %88 = vmatprep.subr.mxu0 0.0
  %89 = vmatpush2.msra.mxu0 0.0
  %90 = vmatprep.subr.mxu0 0.0
  %91 = vmatpush2.msra.mxu0 0.0
  %92 = vmatprep.subr.mxu0 0.0
  %93 = vmatpush2.msra.mxu0 0.0
  %94 = vmatprep.subr.mxu0 0.0
  %95 = vmatpush2.msra.mxu0 0.0
  %96 = vmatprep.subr.mxu0 0.0
  %97 = vmatpush2.msra.mxu0 0.0
  %98 = vmatprep.subr.mxu0 0.0
  %99 = vmatpush2.msra.mxu0 0.0
  %100 = vmatprep.subr.mxu0 0.0
  %101 = vmatpush2.msra.mxu0 0.0
  %102 = vmatprep.subr.mxu0 0.0
  %103 = vmatpush2.msra.mxu0 0.0
  %104 = vmatprep.subr.mxu0 0.0
  %105 = vmatpush2.msra.mxu0 0.0
  %106 = vmatprep.subr.mxu0 0.0
  %107 = vmatpush2.msra.mxu0 0.0
  %108 = vmatprep.subr.mxu0 0.0
  %109 = vmatpush2.msra.mxu0 0.0
  %110 = vmatprep.mubr.f32.mxu0 0.0
  %111 = vmatmul.mubr.f32.gmra.mxu0 %v44
  %v112 = vpop.f32.mrf.mxu0
  %v113 = vadd.f32 %v40, %v112
  %v114 = vpop.f32.mrf.mxu0
  %115 = vdwg.mxu0
  %v116 = vtanh.pop %v113
  %v117 = vld [vmem:[%s3] sm:$0xff]
  %v118 = vld [vmem:[%s3 + $0x8] sm:$0xff]
  %v119 = vld [vmem:[%s3 + $0x10] sm:$0xff]
  %v120 = vld [vmem:[%s3 + $0x18] sm:$0xff]
  %v121 = vld [vmem:[%s3 + $0x20] sm:$0xff]
  %v122 = vld [vmem:[%s3 + $0x28] sm:$0xff]
  %v123 = vld [vmem:[%s3 + $0x30] sm:$0xff]
  %v124 = vld [vmem:[%s3 + $0x38] sm:$0xff]
  %v125 = vld [vmem:[%s3 + $0x40] sm:$0xff]
  %v126 = vld [vmem:[%s3 + $0x48] sm:$0xff]
  %v127 = vld [vmem:[%s3 + $0x50] sm:$0xff]
  %v128 = vld [vmem:[%s3 + $0x58] sm:$0xff]
  %v129 = vld [vmem:[%s3 + $0x60] sm:$0xff]
  %v130 = vld [vmem:[%s3 + $0x68] sm:$0xff]
  %v131 = vld [vmem:[%s3 + $0x70] sm:$0xff]
  %v132 = vld [vmem:[%s3 + $0x78] sm:$0xff]
  %v133 = vld [vmem:[%s4] sm:$0x1]
  %v135 = vlaneseq
  %v136 = vshrl.u32 %v135, 7
  %v137 = vsub.s32 0, %v136
  %v138 = vrot.slane %v133, %v137
  %140 = vmatprep.subr.mxu0 0.0
  %141 = vmatpush1.msra.mxu0 %v132
  %142 = vmatprep.subr.mxu0 0.0
  %143 = vmatpush1.msra.mxu0 %v131
  %144 = vmatprep.subr.mxu0 0.0
  %145 = vmatpush1.msra.mxu0 %v130
  %146 = vmatprep.subr.mxu0 0.0
  %147 = vmatpush1.msra.mxu0 %v129
  %148 = vmatprep.subr.mxu0 0.0
  %149 = vmatpush1.msra.mxu0 %v128
  %150 = vmatprep.subr.mxu0 0.0
  %151 = vmatpush1.msra.mxu0 %v127
  %152 = vmatprep.subr.mxu0 0.0
  %153 = vmatpush1.msra.mxu0 %v126
  %154 = vmatprep.subr.mxu0 0.0
  %155 = vmatpush1.msra.mxu0 %v125
  %156 = vmatprep.subr.mxu0 0.0
  %157 = vmatpush1.msra.mxu0 %v124
  %158 = vmatprep.subr.mxu0 0.0
  %159 = vmatpush1.msra.mxu0 %v123
  %160 = vmatprep.subr.mxu0 0.0
  %161 = vmatpush1.msra.mxu0 %v122
  %162 = vmatprep.subr.mxu0 0.0
  %163 = vmatpush1.msra.mxu0 %v121
  %164 = vmatprep.subr.mxu0 0.0
  %165 = vmatpush1.msra.mxu0 %v120
  %166 = vmatprep.subr.mxu0 0.0
  %167 = vmatpush1.msra.mxu0 %v119
  %168 = vmatprep.subr.mxu0 0.0
  %169 = vmatpush1.msra.mxu0 %v118
  %170 = vmatprep.subr.mxu0 0.0
  %171 = vmatpush1.msra.mxu0 %v117
  %172 = vmatprep.subr.mxu0 0.0
  %173 = vmatpush2.msra.mxu0 0.0
  %174 = vmatprep.subr.mxu0 0.0
  %175 = vmatpush2.msra.mxu0 0.0
  %176 = vmatprep.subr.mxu0 0.0
  %177 = vmatpush2.msra.mxu0 0.0
  %178 = vmatprep.subr.mxu0 0.0
  %179 = vmatpush2.msra.mxu0 0.0
  %180 = vmatprep.subr.mxu0 0.0
  %181 = vmatpush2.msra.mxu0 0.0
  %182 = vmatprep.subr.mxu0 0.0
  %183 = vmatpush2.msra.mxu0 0.0
  %184 = vmatprep.subr.mxu0 0.0
  %185 = vmatpush2.msra.mxu0 0.0
  %186 = vmatprep.subr.mxu0 0.0
  %187 = vmatpush2.msra.mxu0 0.0
  %188 = vmatprep.subr.mxu0 0.0
  %189 = vmatpush2.msra.mxu0 0.0
  %190 = vmatprep.subr.mxu0 0.0
  %191 = vmatpush2.msra.mxu0 0.0
  %192 = vmatprep.subr.mxu0 0.0
  %193 = vmatpush2.msra.mxu0 0.0
  %194 = vmatprep.subr.mxu0 0.0
  %195 = vmatpush2.msra.mxu0 0.0
  %196 = vmatprep.subr.mxu0 0.0
  %197 = vmatpush2.msra.mxu0 0.0
  %198 = vmatprep.subr.mxu0 0.0
  %199 = vmatpush2.msra.mxu0 0.0
  %200 = vmatprep.subr.mxu0 0.0
  %201 = vmatpush2.msra.mxu0 0.0
  %202 = vmatprep.subr.mxu0 0.0
  %203 = vmatpush2.msra.mxu0 0.0
  %204 = vmatprep.mubr.f32.mxu0 0.0
  %205 = vmatmul.mubr.f32.gmra.mxu0 %v116
  %v206 = vpop.f32.mrf.mxu0
  %v207 = vadd.f32 %v138, %v206
  %v208 = vpop.f32.mrf.mxu0
  %209 = vdwg.mxu0
  %v210 = vtanh.pop %v207
  %v211 = vld [vmem:[%s5] sm:$0xff]
  %v212 = vld [vmem:[%s5 + $0x8] sm:$0xff]
  %v213 = vld [vmem:[%s5 + $0x10] sm:$0xff]
  %v214 = vld [vmem:[%s5 + $0x18] sm:$0xff]
  %v215 = vld [vmem:[%s5 + $0x20] sm:$0xff]
  %v216 = vld [vmem:[%s5 + $0x28] sm:$0xff]
  %v217 = vld [vmem:[%s5 + $0x30] sm:$0xff]
  %v218 = vld [vmem:[%s5 + $0x38] sm:$0xff]
  %v219 = vld [vmem:[%s6] sm:$0x1]
  %v221 = vlaneseq
  %v222 = vshrl.u32 %v221, 7
  %v223 = vsub.s32 0, %v222
  %v224 = vrot.slane %v219, %v223
  %vm226 = vcmask 523264
  %v228 = vsel %vm226, %v210, 0
  %230 = vmatprep.subr.mxu0 0.0
  %231 = vmatpush1.msra.mxu0 0.0
  %232 = vmatprep.subr.mxu0 0.0
  %233 = vmatpush1.msra.mxu0 0.0
  %234 = vmatprep.subr.mxu0 0.0
  %235 = vmatpush1.msra.mxu0 0.0
  %236 = vmatprep.subr.mxu0 0.0
  %237 = vmatpush1.msra.mxu0 0.0
  %238 = vmatprep.subr.mxu0 0.0
  %239 = vmatpush1.msra.mxu0 0.0
  %240 = vmatprep.subr.mxu0 0.0
  %241 = vmatpush1.msra.mxu0 0.0
  %242 = vmatprep.subr.mxu0 0.0
  %243 = vmatpush1.msra.mxu0 0.0
  %244 = vmatprep.subr.mxu0 0.0
  %245 = vmatpush1.msra.mxu0 0.0
  %246 = vmatprep.subr.mxu0 0.0
  %247 = vmatpush1.msra.mxu0 %v218
  %248 = vmatprep.subr.mxu0 0.0
  %249 = vmatpush1.msra.mxu0 %v217
  %250 = vmatprep.subr.mxu0 0.0
  %251 = vmatpush1.msra.mxu0 %v216
  %252 = vmatprep.subr.mxu0 0.0
  %253 = vmatpush1.msra.mxu0 %v215
  %254 = vmatprep.subr.mxu0 0.0
  %255 = vmatpush1.msra.mxu0 %v214
  %256 = vmatprep.subr.mxu0 0.0
  %257 = vmatpush1.msra.mxu0 %v213
  %258 = vmatprep.subr.mxu0 0.0
  %259 = vmatpush1.msra.mxu0 %v212
  %260 = vmatprep.subr.mxu0 0.0
  %261 = vmatpush1.msra.mxu0 %v211
  %262 = vmatprep.subr.mxu0 0.0
  %263 = vmatpush2.msra.mxu0 0.0
  %264 = vmatprep.subr.mxu0 0.0
  %265 = vmatpush2.msra.mxu0 0.0
  %266 = vmatprep.subr.mxu0 0.0
  %267 = vmatpush2.msra.mxu0 0.0
  %268 = vmatprep.subr.mxu0 0.0
  %269 = vmatpush2.msra.mxu0 0.0
  %270 = vmatprep.subr.mxu0 0.0
  %271 = vmatpush2.msra.mxu0 0.0
  %272 = vmatprep.subr.mxu0 0.0
  %273 = vmatpush2.msra.mxu0 0.0
  %274 = vmatprep.subr.mxu0 0.0
  %275 = vmatpush2.msra.mxu0 0.0
  %276 = vmatprep.subr.mxu0 0.0
  %277 = vmatpush2.msra.mxu0 0.0
  %278 = vmatprep.subr.mxu0 0.0
  %279 = vmatpush2.msra.mxu0 0.0
  %280 = vmatprep.subr.mxu0 0.0
  %281 = vmatpush2.msra.mxu0 0.0
  %282 = vmatprep.subr.mxu0 0.0
  %283 = vmatpush2.msra.mxu0 0.0
  %284 = vmatprep.subr.mxu0 0.0
  %285 = vmatpush2.msra.mxu0 0.0
  %286 = vmatprep.subr.mxu0 0.0
  %287 = vmatpush2.msra.mxu0 0.0
  %288 = vmatprep.subr.mxu0 0.0
  %289 = vmatpush2.msra.mxu0 0.0
  %290 = vmatprep.subr.mxu0 0.0
  %291 = vmatpush2.msra.mxu0 0.0
  %292 = vmatprep.subr.mxu0 0.0
  %293 = vmatpush2.msra.mxu0 0.0
  %294 = vmatprep.mubr.f32.mxu0 0.0
  %295 = vmatmul.mubr.f32.gmra.mxu0 %v228
  %v296 = vpop.f32.mrf.mxu0
  %v297 = vadd.f32 %v224, %v296
  %v298 = vpop.f32.mrf.mxu0
  %299 = vdwg.mxu0
  %v300 = vtanh.pop %v297
  %v301 = vsub.f32 %v29, %v300
  %v302 = vmul.f32 %v301, %v301
  %v303 = vld [vmem:[%s7] sm:$0x1]
  %v305 = vlaneseq
  %v306 = vshrl.u32 %v305, 7
  %v307 = vsub.s32 0, %v306
  %v308 = vrot.slane %v303, %v307
  %v310 = vmul.f32 %v302, %v308
  %vm311 = vcmask 64512
  %v312 = vsel %vm311, %v310, 0.0
  %313 = vadd.xlane.f32.xlu0 %v312
  %v314 = vpop.xlane.xlu0 %313
  %v315 = vmul.f32 %v314, -0.5
  %317 = vrot.lane.b32.xlu0 %v297, 121
  %v318 = vpop.permute.xlu0 %317
  %vm320 = vcmask 7168
  %v321 = vsel %vm320, %v315, %v318
  %vm322 = vcmask 15360
  %323 = vst.msk [vmem:[%s8] sm:$0xff] %vm322, %v321
  // Predicated region
  $region34: #{tpu_custom_call.1} parent=0 // pred_check
    _
  $region35: #{tpu_custom_call.1} parent=0 // pred_check_branch
    %325 = sbr.rel (0) target = $region37
  $region36: #{tpu_custom_call.1} parent=0 // pred_region
    _
  $region37: #{tpu_custom_call.1} parent=0 // pred_fallthru
    _
  // Predicated region
  $region38: #{tpu_custom_call.1} parent=0 // pred_check
    _
  $region39: #{tpu_custom_call.1} parent=0 // pred_check_branch
    %327 = sbr.rel (0) target = $region41
  $region40: #{tpu_custom_call.1} parent=0 // pred_region
    _
  $region41: #{tpu_custom_call.1} parent=0 // pred_fallthru
    _

</llo_original>
